<compile_context>
chip_gen: v6e
topology: v6e:2x2x1
jax: 0.10.0
libtpu: 0.0.40
codegen_flags: <defaults>
</compile_context>

<pallas_src>
import jax
import jax.numpy as jnp
from jax.experimental import pallas as pl
from jax.experimental.pallas import tpu as pltpu

LANE = 128  # TPU vreg lane width


def _round_up(n: int, m: int) -> int:
    return ((n + m - 1) // m) * m


def _resident_kernel(x_ref, w1_ref, b1_ref, w2_ref, b2_ref, o_ref):
    # Cast streamed f32 x to the MXU dtype in-kernel (cheap VPU work, hidden
    # under the MXU); accumulate in f32, bias/ReLU in f32.
    x = x_ref[...].astype(w1_ref.dtype)
    h = jnp.dot(x, w1_ref[...], preferred_element_type=jnp.float32)
    h = jnp.maximum(h + b1_ref[...], 0.0)
    u = jnp.dot(h.astype(w2_ref.dtype), w2_ref[...],
                preferred_element_type=jnp.float32)
    o_ref[...] = (u + b2_ref[...]).astype(o_ref.dtype)


def _chunked_kernel(x_ref, w1_ref, b1_ref, w2_ref, b2_ref, o_ref, acc_ref):
    # Hidden-dim (K) tiled fallback: W1/W2 chunks are streamed along grid
    # axis 1 ("arbitrary") so the weights never have to be fully VMEM
    # resident, and only a (tile_n, h1_chunk) slice of the intermediate is
    # ever live.  Output block index is constant along axis 1 -> accumulator.
    c = pl.program_id(1)

    @pl.when(c == 0)
    def _():
        acc_ref[...] = jnp.zeros_like(acc_ref)

    x = x_ref[...].astype(w1_ref.dtype)
    h = jnp.dot(x, w1_ref[...], preferred_element_type=jnp.float32)
    h = jnp.maximum(h + b1_ref[...], 0.0)
    acc_ref[...] += jnp.dot(h.astype(w2_ref.dtype), w2_ref[...],
                            preferred_element_type=jnp.float32)

    @pl.when(c == pl.num_programs(1) - 1)
    def _():
        o_ref[...] = (acc_ref[...] + b2_ref[...]).astype(o_ref.dtype)


def two_layer_net(x, w1, b1, w2, b2, *, tile_n=512, compute_dtype=jnp.bfloat16,
                  h1_chunk=None, vmem_budget_bytes=20 * 1024 * 1024):
    """Forward pass of TwoLayerNet: relu(x @ w1 + b1) @ w2 + b2.

    x : (N, D_in) float32 (streamed as-is, cast to compute_dtype in-kernel)
    w1: (D_in, H1)   b1: (1, H1)   (weights stored transposed vs torch)
    w2: (H1, out)    b2: (1, out)
    Returns (N, out) float32.
    """
    N, d_in = x.shape
    h1 = w1.shape[1]
    out_dim = w2.shape[1]
    itemsize_c = jnp.dtype(compute_dtype).itemsize

    # Hidden dim padded to full lanes for the MXU; padding is exact zero
    # (zero bias + ReLU + zero W2 rows contribute nothing).
    h1_pad = _round_up(max(h1, LANE), LANE)

    # ---- row tile selection -------------------------------------------------
    # bf16/int8 pack 2/4 rows per sublane -> prefer 16/32-row alignment.
    row_align = 8 * max(1, 4 // itemsize_c)
    if N < 8:
        tile_n = N  # block dim == full array dim (legal, single tile)
    else:
        cap_batch = _round_up(N, 8)
        # >= 2 grid steps when possible so v7x's two TCs both get work.
        cap_two_steps = max(8, _round_up(-(-N // 2), row_align))
        tile_n = min(tile_n, cap_two_steps, cap_batch)
        tile_n = max(8, _round_up(tile_n, 8))
        if tile_n % row_align and _round_up(tile_n, row_align) <= cap_batch:
            tile_n = _round_up(tile_n, row_align)
        # Shrink the row tile if the double-buffered x/out tiles alone would
        # blow the VMEM budget (v5e default scoped VMEM is only 16 MiB).
        while tile_n > 2 * row_align and \
                2 * tile_n * (d_in + out_dim) * 4 > vmem_budget_bytes // 2:
            tile_n = max(row_align, _round_up(tile_n // 2, 8))

    # ---- resident vs. hidden-dim-chunked kernel selection --------------------
    resident_bytes = ((d_in * h1_pad + h1_pad * out_dim) * itemsize_c
                      + (h1_pad + out_dim) * 4
                      + tile_n * h1_pad * (4 + itemsize_c))  # live intermediate
    use_chunked = (h1_chunk is not None) or (resident_bytes > vmem_budget_bytes)
    if use_chunked:
        if h1_chunk is None:
            h1_chunk = 512
        h1_chunk = min(_round_up(h1_chunk, LANE), h1_pad)
        h1_pad = _round_up(h1_pad, h1_chunk)
        num_chunks = h1_pad // h1_chunk
    else:
        h1_chunk = h1_pad
        num_chunks = 1

    num_row_tiles = pl.cdiv(N, tile_n)

    # ---- wrapper-side weight layout (small, resident/streamed operands) ------
    w1_p = jnp.pad(w1, ((0, 0), (0, h1_pad - h1))).astype(compute_dtype)
    b1_p = jnp.pad(b1, ((0, 0), (0, h1_pad - h1))).astype(jnp.float32)
    w2_p = jnp.pad(w2, ((0, h1_pad - h1), (0, 0))).astype(compute_dtype)
    b2_p = b2.astype(jnp.float32)
    x = x.astype(jnp.float32)  # no pad, no pre-cast: streamed as-is

    # ---- explicit VMEM budget for the compiler --------------------------------
    est_vmem = (2 * tile_n * d_in * 4                       # x tiles (dbl buf)
                + 2 * tile_n * out_dim * 4                  # out tiles (dbl buf)
                + 2 * ((d_in + out_dim) * h1_chunk * itemsize_c
                       + h1_chunk * 4 + out_dim * 4)        # weight/bias blocks
                + tile_n * h1_chunk * (4 + itemsize_c)      # intermediate h
                + tile_n * out_dim * 4                      # acc scratch
                + (2 << 20))                                # headroom
    vmem_limit = int(min(max(est_vmem, 32 * 1024 * 1024), 64 * 1024 * 1024))

    flops = 2 * N * (d_in * h1_pad + h1_pad * out_dim)
    bytes_accessed = (N * d_in * 4 + N * out_dim * 4
                      + (d_in * h1_pad + h1_pad * out_dim) * itemsize_c
                      * (num_row_tiles if use_chunked else 1)
                      + (h1_pad + out_dim) * 4)
    cost = pl.CostEstimate(flops=flops, transcendentals=0,
                           bytes_accessed=bytes_accessed)

    out_shape = jax.ShapeDtypeStruct((N, out_dim), jnp.float32)

    if not use_chunked:
        return pl.pallas_call(
            _resident_kernel,
            out_shape=out_shape,
            grid=(num_row_tiles,),
            in_specs=[
                pl.BlockSpec((tile_n, d_in), lambda i: (i, 0)),      # x: streamed f32
                pl.BlockSpec((d_in, h1_pad), lambda i: (0, 0)),      # W1: resident
                pl.BlockSpec((1, h1_pad), lambda i: (0, 0)),         # b1: resident
                pl.BlockSpec((h1_pad, out_dim), lambda i: (0, 0)),   # W2: resident
                pl.BlockSpec((1, out_dim), lambda i: (0, 0)),        # b2: resident
            ],
            out_specs=pl.BlockSpec((tile_n, out_dim), lambda i: (i, 0)),
            compiler_params=pltpu.CompilerParams(
                dimension_semantics=("parallel",),
                vmem_limit_bytes=vmem_limit),
            cost_estimate=cost,
        )(x, w1_p, b1_p, w2_p, b2_p)

    return pl.pallas_call(
        _chunked_kernel,
        out_shape=out_shape,
        grid=(num_row_tiles, num_chunks),
        in_specs=[
            pl.BlockSpec((tile_n, d_in), lambda i, c: (i, 0)),       # x (fetched once / row tile)
            pl.BlockSpec((d_in, h1_chunk), lambda i, c: (0, c)),     # W1 chunk
            pl.BlockSpec((1, h1_chunk), lambda i, c: (0, c)),        # b1 chunk
            pl.BlockSpec((h1_chunk, out_dim), lambda i, c: (c, 0)),  # W2 chunk
            pl.BlockSpec((1, out_dim), lambda i, c: (0, 0)),         # b2
        ],
        out_specs=pl.BlockSpec((tile_n, out_dim), lambda i, c: (i, 0)),
        scratch_shapes=[pltpu.VMEM((tile_n, out_dim), jnp.float32)],
        compiler_params=pltpu.CompilerParams(
            dimension_semantics=("parallel", "arbitrary"),
            vmem_limit_bytes=vmem_limit),
        cost_estimate=cost,
    )(x, w1_p, b1_p, w2_p, b2_p)


def init_params(key, d_in, h1, out_dim=2):
    """Deterministic init mimicking torch.nn.Linear (uniform +/- 1/sqrt(fan_in))."""
    k1, k2, k3, k4 = jax.random.split(key, 4)
    lim1 = 1.0 / jnp.sqrt(d_in)
    lim2 = 1.0 / jnp.sqrt(h1)
    w1 = jax.random.uniform(k1, (d_in, h1), jnp.float32, -lim1, lim1)
    b1 = jax.random.uniform(k2, (1, h1), jnp.float32, -lim1, lim1)
    w2 = jax.random.uniform(k3, (h1, out_dim), jnp.float32, -lim2, lim2)
    b2 = jax.random.uniform(k4, (1, out_dim), jnp.float32, -lim2, lim2)
    return w1, b1, w2, b2


if __name__ == "__main__":
    key = jax.random.PRNGKey(0)
    kx, kp, kx2, kp2 = jax.random.split(key, 4)

    # --- Case 1: resident-weight path (batch=8, D_in=32, H1=64) --------------
    N, D_IN, H1 = 8, 32, 64
    x = jax.random.normal(kx, (N, D_IN), jnp.float32)
    w1, b1, w2, b2 = init_params(kp, D_IN, H1)
    ref = jnp.maximum(x @ w1 + b1, 0.0) @ w2 + b2

    out_f32 = jax.block_until_ready(
        two_layer_net(x, w1, b1, w2, b2, compute_dtype=jnp.float32))
    assert out_f32.shape == (N, 2)
    assert jnp.allclose(out_f32, ref, atol=1e-3, rtol=1e-3), "f32 resident path mismatch"

    out_bf16 = jax.block_until_ready(
        two_layer_net(x, w1, b1, w2, b2, compute_dtype=jnp.bfloat16))
    assert out_bf16.shape == (N, 2)
    assert jnp.allclose(out_bf16, ref, atol=5e-2, rtol=5e-2), "bf16 resident path mismatch"

    # --- Case 2: ragged last row tile (batch=10, not a multiple of 8) --------
    N2 = 10
    x2 = jax.random.normal(kx2, (N2, D_IN), jnp.float32)
    ref2 = jnp.maximum(x2 @ w1 + b1, 0.0) @ w2 + b2
    out2 = jax.block_until_ready(
        two_layer_net(x2, w1, b1, w2, b2, compute_dtype=jnp.float32))
    assert out2.shape == (N2, 2)
    assert jnp.allclose(out2, ref2, atol=1e-3, rtol=1e-3), "ragged-row path mismatch"

    # --- Case 3: hidden-dim chunked fallback (batch=16, H1=256, chunk=128) ---
    N3, H13 = 16, 256
    x3 = jax.random.normal(kx2, (N3, D_IN), jnp.float32)
    w13, b13, w23, b23 = init_params(kp2, D_IN, H13)
    ref3 = jnp.maximum(x3 @ w13 + b13, 0.0) @ w23 + b23
    out3 = jax.block_until_ready(
        two_layer_net(x3, w13, b13, w23, b23,
                      compute_dtype=jnp.float32, h1_chunk=128))
    assert out3.shape == (N3, 2)
    assert jnp.allclose(out3, ref3, atol=1e-3, rtol=1e-3), "chunked f32 path mismatch"

    out3b = jax.block_until_ready(
        two_layer_net(x3, w13, b13, w23, b23,
                      compute_dtype=jnp.bfloat16, h1_chunk=128))
    assert jnp.allclose(out3b, ref3, atol=5e-2, rtol=5e-2), "chunked bf16 path mismatch"

    print("KERNEL_OK")
</pallas_src>

<mosaic_0001>
module attributes {stable_mosaic.version = 11 : i64} {
  func.func @_resident_kernel(%arg0: i32, %arg1: memref<8x32xf32, #tpu.memory_space<vmem>>, %arg2: memref<32x128xf32, #tpu.memory_space<vmem>>, %arg3: memref<1x128xf32, #tpu.memory_space<vmem>>, %arg4: memref<128x2xf32, #tpu.memory_space<vmem>>, %arg5: memref<1x2xf32, #tpu.memory_space<vmem>>, %arg6: memref<8x2xf32, #tpu.memory_space<vmem>>) attributes {dimension_semantics = [#tpu.dimension_semantics<parallel>], iteration_bounds = array<i64: 1>, scalar_prefetch = 0 : i64, scratch_operands = 0 : i64, tpu.core_type = #tpu.core_type<tc>, window_params = [{transform_indices = @transform_0, window_bounds = array<i64: 8, 32>}, {pipeline_mode = #tpu.pipeline_mode<synchronous>, transform_indices = @transform_1, window_bounds = array<i64: 32, 128>}, {pipeline_mode = #tpu.pipeline_mode<synchronous>, transform_indices = @transform_2, window_bounds = array<i64: 1, 128>}, {pipeline_mode = #tpu.pipeline_mode<synchronous>, transform_indices = @transform_3, window_bounds = array<i64: 128, 2>}, {pipeline_mode = #tpu.pipeline_mode<synchronous>, transform_indices = @transform_4, window_bounds = array<i64: 1, 2>}, {transform_indices = @transform_5, window_bounds = array<i64: 8, 2>}]} {
    %c0 = arith.constant 0 : index
    %c0_0 = arith.constant 0 : index
    %0 = vector.load %arg1[%c0, %c0_0] : memref<8x32xf32, #tpu.memory_space<vmem>>, vector<8x32xf32>
    %c0_1 = arith.constant 0 : index
    %c0_2 = arith.constant 0 : index
    %1 = vector.load %arg2[%c0_1, %c0_2] : memref<32x128xf32, #tpu.memory_space<vmem>>, vector<32x128xf32>
    %cst = arith.constant dense<0.000000e+00> : vector<8x128xf32>
    %2 = tpu.matmul %0, %1, %cst {dimension_numbers = #tpu.dot_dimension_numbers<[1], [0], [0], [1], [0, 0, 1, 1], [], []>} : vector<8x32xf32>, vector<32x128xf32>, vector<8x128xf32> -> vector<8x128xf32>
    %c0_3 = arith.constant 0 : index
    %c0_4 = arith.constant 0 : index
    %3 = vector.load %arg3[%c0_3, %c0_4] : memref<1x128xf32, #tpu.memory_space<vmem>>, vector<1x128xf32>
    %4 = vector.broadcast %3 : vector<1x128xf32> to vector<8x128xf32>
    %5 = arith.addf %2, %4 : vector<8x128xf32>
    %cst_5 = arith.constant 0.000000e+00 : f32
    %6 = vector.broadcast %cst_5 : f32 to vector<8x128xf32>
    %7 = arith.maximumf %5, %6 : vector<8x128xf32>
    %c0_6 = arith.constant 0 : index
    %c0_7 = arith.constant 0 : index
    %8 = vector.load %arg4[%c0_6, %c0_7] : memref<128x2xf32, #tpu.memory_space<vmem>>, vector<128x2xf32>
    %cst_8 = arith.constant dense<0.000000e+00> : vector<8x2xf32>
    %9 = tpu.matmul %7, %8, %cst_8 {dimension_numbers = #tpu.dot_dimension_numbers<[1], [0], [0], [1], [0, 0, 1, 1], [], []>} : vector<8x128xf32>, vector<128x2xf32>, vector<8x2xf32> -> vector<8x2xf32>
    %c0_9 = arith.constant 0 : index
    %c0_10 = arith.constant 0 : index
    %10 = vector.load %arg5[%c0_9, %c0_10] : memref<1x2xf32, #tpu.memory_space<vmem>>, vector<1x2xf32>
    %11 = vector.broadcast %10 : vector<1x2xf32> to vector<8x2xf32>
    %12 = arith.addf %9, %11 : vector<8x2xf32>
    %c0_11 = arith.constant 0 : index
    %c0_12 = arith.constant 0 : index
    %13 = vector.load %arg6[%c0_11, %c0_12] : memref<8x2xf32, #tpu.memory_space<vmem>>, vector<8x2xf32>
    tpu.vector_store %arg6[%c0_11, %c0_12], %12 {strides = array<i32>} : memref<8x2xf32, #tpu.memory_space<vmem>>, vector<8x2xf32>,
    return
  }
  func.func @transform_0(%arg0: i32) -> (i32, i32) {
    %c0_i32 = arith.constant 0 : i32
    %c0_i32_0 = arith.constant 0 : i32
    return %arg0, %c0_i32 : i32, i32
  }
  func.func @transform_1(%arg0: i32) -> (i32, i32) {
    %c0_i32 = arith.constant 0 : i32
    %c0_i32_0 = arith.constant 0 : i32
    %c0_i32_1 = arith.constant 0 : i32
    return %c0_i32, %c0_i32_0 : i32, i32
  }
  func.func @transform_2(%arg0: i32) -> (i32, i32) {
    %c0_i32 = arith.constant 0 : i32
    %c0_i32_0 = arith.constant 0 : i32
    %c0_i32_1 = arith.constant 0 : i32
    return %c0_i32, %c0_i32_0 : i32, i32
  }
  func.func @transform_3(%arg0: i32) -> (i32, i32) {
    %c0_i32 = arith.constant 0 : i32
    %c0_i32_0 = arith.constant 0 : i32
    %c0_i32_1 = arith.constant 0 : i32
    return %c0_i32, %c0_i32_0 : i32, i32
  }
  func.func @transform_4(%arg0: i32) -> (i32, i32) {
    %c0_i32 = arith.constant 0 : i32
    %c0_i32_0 = arith.constant 0 : i32
    %c0_i32_1 = arith.constant 0 : i32
    return %c0_i32, %c0_i32_0 : i32, i32
  }
  func.func @transform_5(%arg0: i32) -> (i32, i32) {
    %c0_i32 = arith.constant 0 : i32
    %c0_i32_0 = arith.constant 0 : i32
    return %arg0, %c0_i32 : i32, i32
  }
}

</mosaic_0001>

<llo_original>
// kernel: tpu_custom_call.1
$region0: #{tpu_custom_call.1}
  #allocation0 [shape = 'u32[]', space=smem, size = 0x4, offset = 0x4, fixed_abs, tag = 'smem constant byte address 0x4 - core index']
  #allocation1 [shape = 'u32[144,128]{1,0:T(1,128)}', space=vmem, size = 0x12000, scoped, tag = 'internal scratch']
  %s0 = inlined_call_operand.vmem [shape: f32[8,32], index: 0, kind: input, shape index: {}]
  %s1 = inlined_call_operand.vmem [shape: f32[32,128], index: 1, kind: input, shape index: {}]
  %s2 = inlined_call_operand.vmem [shape: f32[1,128], index: 2, kind: input, shape index: {}]
  %s3 = inlined_call_operand.vmem [shape: f32[128,2], index: 3, kind: input, shape index: {}]
  %s4 = inlined_call_operand.vmem [shape: f32[1,2], index: 4, kind: input, shape index: {}]
  %s5 = inlined_call_operand.vmem [shape: f32[8,2], index: 5, kind: output, shape index: {}]
  %s6 = sld [smem:[#allocation0]]
  $region30: #{tpu_custom_call.1} parent=0
    _
  %s8 = ssub.s32 1, %s6
  %s9 = scalar_select 0, %s8, %s6
  // Predicated region
  $region2: #{tpu_custom_call.1} parent=0 // pred_check
    _
  $region3: #{tpu_custom_call.1} parent=0 // pred_check_branch
    %11 = sbr.rel (0) target = $region5
  $region4: #{tpu_custom_call.1} parent=0 // pred_region
    _
  $region5: #{tpu_custom_call.1} parent=0 // pred_fallthru
    _
  // Predicated region
  $region6: #{tpu_custom_call.1} parent=0 // pred_check
    _
  $region7: #{tpu_custom_call.1} parent=0 // pred_check_branch
    %13 = sbr.rel (0) target = $region9
  $region8: #{tpu_custom_call.1} parent=0 // pred_region
    _
  $region9: #{tpu_custom_call.1} parent=0 // pred_fallthru
    _
  // Predicated region
  $region10: #{tpu_custom_call.1} parent=0 // pred_check
    _
  $region11: #{tpu_custom_call.1} parent=0 // pred_check_branch
    %15 = sbr.rel (0) target = $region13
  $region12: #{tpu_custom_call.1} parent=0 // pred_region
    _
  $region13: #{tpu_custom_call.1} parent=0 // pred_fallthru
    _
  // Predicated region
  $region14: #{tpu_custom_call.1} parent=0 // pred_check
    _
  $region15: #{tpu_custom_call.1} parent=0 // pred_check_branch
    %17 = sbr.rel (0) target = $region17
  $region16: #{tpu_custom_call.1} parent=0 // pred_region
    _
  $region17: #{tpu_custom_call.1} parent=0 // pred_fallthru
    _
  // Predicated region
  $region18: #{tpu_custom_call.1} parent=0 // pred_check
    _
  $region19: #{tpu_custom_call.1} parent=0 // pred_check_branch
    %19 = sbr.rel (0) target = $region21
  $region20: #{tpu_custom_call.1} parent=0 // pred_region
    _
  $region21: #{tpu_custom_call.1} parent=0 // pred_fallthru
    _
  %v20 = vld [vmem:[%s0] sm:$0xff]
  %v21 = vld [vmem:[%s1] sm:$0xff]
  %v22 = vld [vmem:[%s1 + $0x8] sm:$0xff]
  %v23 = vld [vmem:[%s1 + $0x10] sm:$0xff]
  %v24 = vld [vmem:[%s1 + $0x18] sm:$0xff]
  %v25 = vld [vmem:[%s2] sm:$0x1]
  %v27 = vlaneseq
  %v28 = vshrl.u32 %v27, 7
  %v29 = vsub.s32 0, %v28
  %v30 = vrot.slane %v25, %v29
  %vm32 = vcmask 261120
  %v34 = vsel %vm32, %v20, 0
  %36 = vmatprep.subr.mxu0 0.0
  %37 = vmatpush1.msra.mxu0 0.0
  %38 = vmatprep.subr.mxu0 0.0
  %39 = vmatpush1.msra.mxu0 0.0
  %40 = vmatprep.subr.mxu0 0.0
  %41 = vmatpush1.msra.mxu0 0.0
  %42 = vmatprep.subr.mxu0 0.0
  %43 = vmatpush1.msra.mxu0 0.0
  %44 = vmatprep.subr.mxu0 0.0
  %45 = vmatpush1.msra.mxu0 0.0
  %46 = vmatprep.subr.mxu0 0.0
  %47 = vmatpush1.msra.mxu0 0.0
  %48 = vmatprep.subr.mxu0 0.0
  %49 = vmatpush1.msra.mxu0 0.0
  %50 = vmatprep.subr.mxu0 0.0
  %51 = vmatpush1.msra.mxu0 0.0
  %52 = vmatprep.subr.mxu0 0.0
  %53 = vmatpush1.msra.mxu0 0.0
  %54 = vmatprep.subr.mxu0 0.0
  %55 = vmatpush1.msra.mxu0 0.0
  %56 = vmatprep.subr.mxu0 0.0
  %57 = vmatpush1.msra.mxu0 0.0
  %58 = vmatprep.subr.mxu0 0.0
  %59 = vmatpush1.msra.mxu0 0.0
  %60 = vmatprep.subr.mxu0 0.0
  %61 = vmatpush1.msra.mxu0 %v24
  %62 = vmatprep.subr.mxu0 0.0
  %63 = vmatpush1.msra.mxu0 %v23
  %64 = vmatprep.subr.mxu0 0.0
  %65 = vmatpush1.msra.mxu0 %v22
  %66 = vmatprep.subr.mxu0 0.0
  %67 = vmatpush1.msra.mxu0 %v21
  %68 = vmatprep.subr.mxu0 0.0
  %69 = vmatpush2.msra.mxu0 0.0
  %70 = vmatprep.subr.mxu0 0.0
  %71 = vmatpush2.msra.mxu0 0.0
  %72 = vmatprep.subr.mxu0 0.0
  %73 = vmatpush2.msra.mxu0 0.0
  %74 = vmatprep.subr.mxu0 0.0
  %75 = vmatpush2.msra.mxu0 0.0
  %76 = vmatprep.subr.mxu0 0.0
  %77 = vmatpush2.msra.mxu0 0.0
  %78 = vmatprep.subr.mxu0 0.0
  %79 = vmatpush2.msra.mxu0 0.0
  %80 = vmatprep.subr.mxu0 0.0
  %81 = vmatpush2.msra.mxu0 0.0
  %82 = vmatprep.subr.mxu0 0.0
  %83 = vmatpush2.msra.mxu0 0.0
  %84 = vmatprep.subr.mxu0 0.0
  %85 = vmatpush2.msra.mxu0 0.0
  %86 = vmatprep.subr.mxu0 0.0
  %87 = vmatpush2.msra.mxu0 0.0
  %88 = vmatprep.subr.mxu0 0.0
  %89 = vmatpush2.msra.mxu0 0.0
  %90 = vmatprep.subr.mxu0 0.0
  %91 = vmatpush2.msra.mxu0 0.0
  %92 = vmatprep.subr.mxu0 0.0
  %93 = vmatpush2.msra.mxu0 0.0
  %94 = vmatprep.subr.mxu0 0.0
  %95 = vmatpush2.msra.mxu0 0.0
  %96 = vmatprep.subr.mxu0 0.0
  %97 = vmatpush2.msra.mxu0 0.0
  %98 = vmatprep.subr.mxu0 0.0
  %99 = vmatpush2.msra.mxu0 0.0
  %100 = vmatprep.mubr.f32.mxu0 0.0
  %101 = vmatmul.mubr.f32.gmra.mxu0 %v34
  %v102 = vpop.f32.mrf.mxu0
  %v103 = vadd.f32 %v30, %v102
  %v104 = vpop.f32.mrf.mxu0
  %105 = vdwg.mxu0
  %v106 = vmax.f32 %v103, 0.0
  %v107 = vld [vmem:[%s3] sm:$0xff]
  %v108 = vld [vmem:[%s3 + $0x8] sm:$0xff]
  %v109 = vld [vmem:[%s3 + $0x10] sm:$0xff]
  %v110 = vld [vmem:[%s3 + $0x18] sm:$0xff]
  %v111 = vld [vmem:[%s3 + $0x20] sm:$0xff]
  %v112 = vld [vmem:[%s3 + $0x28] sm:$0xff]
  %v113 = vld [vmem:[%s3 + $0x30] sm:$0xff]
  %v114 = vld [vmem:[%s3 + $0x38] sm:$0xff]
  %v115 = vld [vmem:[%s3 + $0x40] sm:$0xff]
  %v116 = vld [vmem:[%s3 + $0x48] sm:$0xff]
  %v117 = vld [vmem:[%s3 + $0x50] sm:$0xff]
  %v118 = vld [vmem:[%s3 + $0x58] sm:$0xff]
  %v119 = vld [vmem:[%s3 + $0x60] sm:$0xff]
  %v120 = vld [vmem:[%s3 + $0x68] sm:$0xff]
  %v121 = vld [vmem:[%s3 + $0x70] sm:$0xff]
  %v122 = vld [vmem:[%s3 + $0x78] sm:$0xff]
  %v123 = vld [vmem:[%s4] sm:$0x1]
  %v125 = vlaneseq
  %v126 = vshrl.u32 %v125, 7
  %v127 = vsub.s32 0, %v126
  %v128 = vrot.slane %v123, %v127
  %130 = vmatprep.subr.mxu0 0.0
  %131 = vmatpush1.msra.mxu0 %v122
  %132 = vmatprep.subr.mxu0 0.0
  %133 = vmatpush1.msra.mxu0 %v121
  %134 = vmatprep.subr.mxu0 0.0
  %135 = vmatpush1.msra.mxu0 %v120
  %136 = vmatprep.subr.mxu0 0.0
  %137 = vmatpush1.msra.mxu0 %v119
  %138 = vmatprep.subr.mxu0 0.0
  %139 = vmatpush1.msra.mxu0 %v118
  %140 = vmatprep.subr.mxu0 0.0
  %141 = vmatpush1.msra.mxu0 %v117
  %142 = vmatprep.subr.mxu0 0.0
  %143 = vmatpush1.msra.mxu0 %v116
  %144 = vmatprep.subr.mxu0 0.0
  %145 = vmatpush1.msra.mxu0 %v115
  %146 = vmatprep.subr.mxu0 0.0
  %147 = vmatpush1.msra.mxu0 %v114
  %148 = vmatprep.subr.mxu0 0.0
  %149 = vmatpush1.msra.mxu0 %v113
  %150 = vmatprep.subr.mxu0 0.0
  %151 = vmatpush1.msra.mxu0 %v112
  %152 = vmatprep.subr.mxu0 0.0
  %153 = vmatpush1.msra.mxu0 %v111
  %154 = vmatprep.subr.mxu0 0.0
  %155 = vmatpush1.msra.mxu0 %v110
  %156 = vmatprep.subr.mxu0 0.0
  %157 = vmatpush1.msra.mxu0 %v109
  %158 = vmatprep.subr.mxu0 0.0
  %159 = vmatpush1.msra.mxu0 %v108
  %160 = vmatprep.subr.mxu0 0.0
  %161 = vmatpush1.msra.mxu0 %v107
  %162 = vmatprep.subr.mxu0 0.0
  %163 = vmatpush2.msra.mxu0 0.0
  %164 = vmatprep.subr.mxu0 0.0
  %165 = vmatpush2.msra.mxu0 0.0
  %166 = vmatprep.subr.mxu0 0.0
  %167 = vmatpush2.msra.mxu0 0.0
  %168 = vmatprep.subr.mxu0 0.0
  %169 = vmatpush2.msra.mxu0 0.0
  %170 = vmatprep.subr.mxu0 0.0
  %171 = vmatpush2.msra.mxu0 0.0
  %172 = vmatprep.subr.mxu0 0.0
  %173 = vmatpush2.msra.mxu0 0.0
  %174 = vmatprep.subr.mxu0 0.0
  %175 = vmatpush2.msra.mxu0 0.0
  %176 = vmatprep.subr.mxu0 0.0
  %177 = vmatpush2.msra.mxu0 0.0
  %178 = vmatprep.subr.mxu0 0.0
  %179 = vmatpush2.msra.mxu0 0.0
  %180 = vmatprep.subr.mxu0 0.0
  %181 = vmatpush2.msra.mxu0 0.0
  %182 = vmatprep.subr.mxu0 0.0
  %183 = vmatpush2.msra.mxu0 0.0
  %184 = vmatprep.subr.mxu0 0.0
  %185 = vmatpush2.msra.mxu0 0.0
  %186 = vmatprep.subr.mxu0 0.0
  %187 = vmatpush2.msra.mxu0 0.0
  %188 = vmatprep.subr.mxu0 0.0
  %189 = vmatpush2.msra.mxu0 0.0
  %190 = vmatprep.subr.mxu0 0.0
  %191 = vmatpush2.msra.mxu0 0.0
  %192 = vmatprep.subr.mxu0 0.0
  %193 = vmatpush2.msra.mxu0 0.0
  %194 = vmatprep.mubr.f32.mxu0 0.0
  %195 = vmatmul.mubr.f32.gmra.mxu0 %v106
  %v196 = vpop.f32.mrf.mxu0
  %v197 = vadd.f32 %v128, %v196
  %v198 = vpop.f32.mrf.mxu0
  %199 = vdwg.mxu0
  %vm200 = vcmask 15360
  %201 = vst.msk [vmem:[%s5] sm:$0xff] %vm200, %v197
  // Predicated region
  $region22: #{tpu_custom_call.1} parent=0 // pred_check
    _
  $region23: #{tpu_custom_call.1} parent=0 // pred_check_branch
    %203 = sbr.rel (0) target = $region25
  $region24: #{tpu_custom_call.1} parent=0 // pred_region
    _
  $region25: #{tpu_custom_call.1} parent=0 // pred_fallthru
    _
  // Predicated region
  $region26: #{tpu_custom_call.1} parent=0 // pred_check
    _
  $region27: #{tpu_custom_call.1} parent=0 // pred_check_branch
    %205 = sbr.rel (0) target = $region29
  $region28: #{tpu_custom_call.1} parent=0 // pred_region
    _
  $region29: #{tpu_custom_call.1} parent=0 // pred_fallthru
    _

</llo_original>
